<compile_context>
chip_gen: v7x
topology: tpu7x:2x2x1
jax: 0.10.0
libtpu: 0.0.40
codegen_flags: <defaults>
</compile_context>

<pallas_src>
import functools

import jax
import jax.numpy as jnp
from jax import lax
from jax.experimental import pallas as pl
from jax.experimental.pallas import tpu as pltpu

SPIKE_THRESHOLD = 30.0  # same constant as the PyTorch module


def _round_up(x, m):
    return ((x + m - 1) // m) * m


def _lif_kernel(params_ref, wT_ref, x_ref, v_out, s_out, g_out,
                v_scr, g_scr, *, t_chunk, unroll):
    c = pl.program_id(0)

    # Load initial state into the persistent VMEM scratch on the first chunk.
    @pl.when(c == 0)
    def _init():
        v_scr[...] = params_ref[4:5, :]
        g_scr[...] = params_ref[5:6, :]

    # Loop-invariant loads / broadcasts -- hoisted once per chunk.
    E_L     = params_ref[0:1, :]        # (1, N)
    R_I     = params_ref[1:2, :]
    inv_Cm  = params_ref[2:3, :]        # 1 / C_m (precomputed)
    g_decay = params_ref[3:4, :]        # 1 - 1 / tau_g (precomputed)
    ones    = jnp.ones_like(g_scr[...])
    wT      = wT_ref[...]               # resident transposed weights

    def step(t, carry):
        v, g = carry                    # (1, N) each
        x = x_ref[pl.ds(t, 1), :]       # (1, N) -- this timestep's input

        # I = w @ g + x_in  (weights stored transposed -> row-vector matvec)
        gw = jnp.dot(g.astype(wT.dtype), wT,
                     preferred_element_type=jnp.float32)
        I = gw + x

        # dv = (E_L - v + I * R_I) / C_m   ->  multiply by precomputed 1/C_m
        v_next = v + (E_L - v + I * R_I) * inv_Cm

        # "soft" spike (sigmoid) -- second module output
        spiked_sig = jax.nn.sigmoid(v_next - SPIKE_THRESHOLD)

        # hard spike decision + state resets via one select each
        fired = v_next >= SPIKE_THRESHOLD
        v_new = jnp.where(fired, E_L, v_next)
        g_new = jnp.where(fired, ones, g * g_decay)

        # lane-dense per-timestep stores into the chunk's output tiles
        v_out[pl.ds(t, 1), :] = v_new
        s_out[pl.ds(t, 1), :] = spiked_sig
        g_out[pl.ds(t, 1), :] = g_new
        return (v_new, g_new)

    v_fin, g_fin = lax.fori_loop(0, t_chunk, step,
                                 (v_scr[...], g_scr[...]), unroll=unroll)

    # carry state to the next chunk
    v_scr[...] = v_fin
    g_scr[...] = g_fin


def lif_forward_seq(x_seq, v0, g0, w, E_L, C_m, tau_g, R_I,
                    *, weight_dtype=jnp.float32, t_chunk=None):
    """Runs T LIF steps in one fused kernel.

    x_seq: (T, N) inputs.  v0, g0, E_L, C_m, tau_g, R_I: (N,).  w: (N, N).
    Returns (v_seq, spiked_seq, g_seq), each (T, N) float32.
    weight_dtype=jnp.bfloat16 halves the resident weight footprint (recommended
    for large N, esp. on v7x's 64 MiB VMEM) at slightly relaxed numerics.
    """
    f32 = jnp.float32
    T_steps, N = x_seq.shape

    # --- padding / chunking choices -------------------------------------
    N_pad = max(128, _round_up(N, 128))            # lane-dense layout
    if t_chunk is None:
        t_chunk = min(128, _round_up(T_steps, 8))  # amortize grid-step overhead
    t_chunk = _round_up(t_chunk, 8)                # (8, 128) tile constraint
    T_pad = _round_up(T_steps, t_chunk)
    n_chunks = T_pad // t_chunk
    unroll = min(t_chunk, 8)

    # --- pack per-neuron parameters + initial state into one (8, N) slab ---
    def pad1(a):
        a = jnp.asarray(a, f32)
        return jnp.pad(a, (0, N_pad - N))

    params = jnp.zeros((8, N_pad), f32)
    params = (params
              .at[0].set(pad1(E_L))
              .at[1].set(pad1(R_I))
              .at[2].set(pad1(1.0 / jnp.asarray(C_m, f32)))
              .at[3].set(pad1(1.0 - 1.0 / jnp.asarray(tau_g, f32)))
              .at[4].set(pad1(v0))
              .at[5].set(pad1(g0)))

    # One-time transpose + zero-pad (padded neurons contribute nothing).
    wT = jnp.asarray(w, f32).T
    wT = jnp.pad(wT, ((0, N_pad - N), (0, N_pad - N))).astype(weight_dtype)

    x = jnp.pad(jnp.asarray(x_seq, f32),
                ((0, T_pad - T_steps), (0, N_pad - N)))

    # --- specs ------------------------------------------------------------
    resident = dict(pipeline_mode=pl.Buffered(1))  # constant index_map inputs

    grid_spec = pltpu.PrefetchScalarGridSpec(
        num_scalar_prefetch=0,
        grid=(n_chunks,),
        in_specs=[
            # parameter slab: resident across all chunks (single DMA, 1 buffer)
            pl.BlockSpec((8, N_pad), lambda c: (0, 0), **resident),
            # transposed weights: resident across all chunks (single DMA, 1 buffer)
            pl.BlockSpec((N_pad, N_pad), lambda c: (0, 0), **resident),
            # per-chunk input tile
            pl.BlockSpec((t_chunk, N_pad), lambda c: (c, 0)),
        ],
        # three separate lane-dense per-chunk output tiles
        out_specs=[
            pl.BlockSpec((t_chunk, N_pad), lambda c: (c, 0)),
            pl.BlockSpec((t_chunk, N_pad), lambda c: (c, 0)),
            pl.BlockSpec((t_chunk, N_pad), lambda c: (c, 0)),
        ],
        scratch_shapes=[
            pltpu.VMEM((1, N_pad), f32),   # v state carried across chunks
            pltpu.VMEM((1, N_pad), f32),   # g state carried across chunks
        ],
    )

    # Explicit scoped-VMEM budget: weights + params + pipelined x/out + scratch.
    itemsize_w = jnp.dtype(weight_dtype).itemsize
    vmem_bytes = (2 * N_pad * N_pad * itemsize_w       # weights (headroom)
                  + 2 * 8 * N_pad * 4                  # params
                  + 2 * t_chunk * N_pad * 4            # x (double buffered)
                  + 3 * 2 * t_chunk * N_pad * 4        # outputs (double buffered)
                  + 2 * N_pad * 4)                     # state scratch
    vmem_limit = max(2 * vmem_bytes + (4 << 20), 32 << 20)
    vmem_limit = int(min(vmem_limit, 96 << 20))

    kernel = functools.partial(_lif_kernel, t_chunk=t_chunk, unroll=unroll)

    v_seq, spk_seq, g_seq = pl.pallas_call(
        kernel,
        out_shape=(jax.ShapeDtypeStruct((T_pad, N_pad), f32),
                   jax.ShapeDtypeStruct((T_pad, N_pad), f32),
                   jax.ShapeDtypeStruct((T_pad, N_pad), f32)),
        grid_spec=grid_spec,
        compiler_params=pltpu.CompilerParams(
            # time-chunk axis carries state -> must stay sequential
            dimension_semantics=("arbitrary",),
            vmem_limit_bytes=vmem_limit,
        ),
    )(params, wT, x)

    return (v_seq[:T_steps, :N],
            spk_seq[:T_steps, :N],
            g_seq[:T_steps, :N])


if __name__ == "__main__":
    N = 4
    T_steps = 8
    key = jax.random.PRNGKey(0)
    k_w, k_x, k_g = jax.random.split(key, 3)

    # module parameters (same construction as the PyTorch __init__)
    w_mean, w_var = 0.15, 0.25
    u = jax.random.uniform(k_w, (N, N), dtype=jnp.float32)
    w = w_mean - w_var + 2.0 * w_var * u
    E_L = jnp.full((N,), -65.0, jnp.float32)
    C_m = jnp.full((N,), 1.0, jnp.float32)
    tau_g = jnp.full((N,), 2.0, jnp.float32)
    R_I = jnp.full((N,), 42.0, jnp.float32)

    # state: nonzero g so the recurrent matmul path is exercised
    v0 = jnp.zeros((N,), jnp.float32)
    g0 = jax.random.uniform(k_g, (N,), dtype=jnp.float32)

    # input sequence; spike one neuron at t=0 to exercise the reset branch
    x_seq = jax.random.normal(k_x, (T_steps, N), dtype=jnp.float32)
    x_seq = x_seq.at[0, 0].set(4.0)

    v_seq, spk_seq, g_seq = lif_forward_seq(
        x_seq, v0, g0, w, E_L, C_m, tau_g, R_I)
    jax.block_until_ready((v_seq, spk_seq, g_seq))

    # pure-JAX reference replicating the PyTorch forward exactly
    def ref_step(carry, x):
        v, g = carry
        I = w @ g + x
        dv = (E_L - v + I * R_I) / C_m
        v_next = v + dv
        spiked_sig = 1.0 / (1.0 + jnp.exp(-(v_next - SPIKE_THRESHOLD)))
        hard = (v_next >= SPIKE_THRESHOLD).astype(jnp.float32)
        not_sp = (hard - 1.0) / -1.0
        v_new = hard * E_L + not_sp * v_next
        dg = -(g / tau_g)
        g_new = hard * jnp.ones_like(g) + not_sp * (g + dg)
        return (v_new, g_new), (v_new, spiked_sig, g_new)

    _, (v_ref, s_ref, g_ref) = jax.lax.scan(ref_step, (v0, g0), x_seq)

    assert jnp.allclose(v_seq, v_ref, atol=1e-4, rtol=1e-4), (v_seq, v_ref)
    assert jnp.allclose(spk_seq, s_ref, atol=1e-5), (spk_seq, s_ref)
    assert jnp.allclose(g_seq, g_ref, atol=1e-5), (g_seq, g_ref)

    print("KERNEL_OK")
</pallas_src>

<mosaic_0001>
module attributes {stable_mosaic.version = 11 : i64} {
  func.func @_lif_kernel(%arg0: i32, %arg1: memref<8x128xf32, #tpu.memory_space<vmem>>, %arg2: memref<128x128xf32, #tpu.memory_space<vmem>>, %arg3: memref<8x128xf32, #tpu.memory_space<vmem>>, %arg4: memref<8x128xf32, #tpu.memory_space<vmem>>, %arg5: memref<8x128xf32, #tpu.memory_space<vmem>>, %arg6: memref<8x128xf32, #tpu.memory_space<vmem>>, %arg7: memref<1x128xf32, #tpu.memory_space<vmem>>, %arg8: memref<1x128xf32, #tpu.memory_space<vmem>>) attributes {dimension_semantics = [#tpu.dimension_semantics<arbitrary>], iteration_bounds = array<i64: 1>, scalar_prefetch = 0 : i64, scratch_operands = 2 : i64, tpu.core_type = #tpu.core_type<tc>, window_params = [{pipeline_mode = #tpu.pipeline_mode<synchronous>, transform_indices = @transform_0, window_bounds = array<i64: 8, 128>}, {pipeline_mode = #tpu.pipeline_mode<synchronous>, transform_indices = @transform_1, window_bounds = array<i64: 128, 128>}, {transform_indices = @transform_2, window_bounds = array<i64: 8, 128>}, {transform_indices = @transform_3, window_bounds = array<i64: 8, 128>}, {transform_indices = @transform_4, window_bounds = array<i64: 8, 128>}, {transform_indices = @transform_5, window_bounds = array<i64: 8, 128>}]} {
    %c0_i32 = arith.constant 0 : i32
    %0 = arith.cmpi eq, %arg0, %c0_i32 : i32
    %1 = arith.extui %0 : i1 to i32
    %c0_i32_0 = arith.constant 0 : i32
    %2 = arith.cmpi ne, %1, %c0_i32_0 : i32
    scf.if %2 {
      %c4 = arith.constant 4 : index
      %c0_80 = arith.constant 0 : index
      %229 = vector.load %arg1[%c4, %c0_80] : memref<8x128xf32, #tpu.memory_space<vmem>>, vector<1x128xf32>
      %c0_81 = arith.constant 0 : index
      %c0_82 = arith.constant 0 : index
      %230 = vector.load %arg7[%c0_81, %c0_82] : memref<1x128xf32, #tpu.memory_space<vmem>>, vector<1x128xf32>
      tpu.vector_store %arg7[%c0_81, %c0_82], %229 {strides = array<i32>} : memref<1x128xf32, #tpu.memory_space<vmem>>, vector<1x128xf32>,
      %c5 = arith.constant 5 : index
      %c0_83 = arith.constant 0 : index
      %231 = vector.load %arg1[%c5, %c0_83] : memref<8x128xf32, #tpu.memory_space<vmem>>, vector<1x128xf32>
      %c0_84 = arith.constant 0 : index
      %c0_85 = arith.constant 0 : index
      %232 = vector.load %arg8[%c0_84, %c0_85] : memref<1x128xf32, #tpu.memory_space<vmem>>, vector<1x128xf32>
      tpu.vector_store %arg8[%c0_84, %c0_85], %231 {strides = array<i32>} : memref<1x128xf32, #tpu.memory_space<vmem>>, vector<1x128xf32>,
    } else {
    }
    %c0 = arith.constant 0 : index
    %c0_1 = arith.constant 0 : index
    %3 = vector.load %arg1[%c0, %c0_1] : memref<8x128xf32, #tpu.memory_space<vmem>>, vector<1x128xf32>
    %c1 = arith.constant 1 : index
    %c0_2 = arith.constant 0 : index
    %4 = vector.load %arg1[%c1, %c0_2] : memref<8x128xf32, #tpu.memory_space<vmem>>, vector<1x128xf32>
    %c2 = arith.constant 2 : index
    %c0_3 = arith.constant 0 : index
    %5 = vector.load %arg1[%c2, %c0_3] : memref<8x128xf32, #tpu.memory_space<vmem>>, vector<1x128xf32>
    %c3 = arith.constant 3 : index
    %c0_4 = arith.constant 0 : index
    %6 = vector.load %arg1[%c3, %c0_4] : memref<8x128xf32, #tpu.memory_space<vmem>>, vector<1x128xf32>
    %cst = arith.constant 1.000000e+00 : f32
    %7 = vector.broadcast %cst : f32 to vector<1x128xf32>
    %c0_5 = arith.constant 0 : index
    %c0_6 = arith.constant 0 : index
    %8 = vector.load %arg2[%c0_5, %c0_6] : memref<128x128xf32, #tpu.memory_space<vmem>>, vector<128x128xf32>
    %c0_7 = arith.constant 0 : index
    %c0_8 = arith.constant 0 : index
    %9 = vector.load %arg7[%c0_7, %c0_8] : memref<1x128xf32, #tpu.memory_space<vmem>>, vector<1x128xf32>
    %c0_9 = arith.constant 0 : index
    %c0_10 = arith.constant 0 : index
    %10 = vector.load %arg8[%c0_9, %c0_10] : memref<1x128xf32, #tpu.memory_space<vmem>>, vector<1x128xf32>
    %c0_i32_11 = arith.constant 0 : i32
    %11 = arith.index_cast %c0_i32_11 : i32 to index
    %c0_12 = arith.constant 0 : index
    %12 = vector.load %arg3[%11, %c0_12] : memref<8x128xf32, #tpu.memory_space<vmem>>, vector<1x128xf32>
    %cst_13 = arith.constant dense<0.000000e+00> : vector<1x128xf32>
    %13 = tpu.matmul %10, %8, %cst_13 {dimension_numbers = #tpu.dot_dimension_numbers<[1], [0], [0], [1], [0, 0, 1, 1], [], []>} : vector<1x128xf32>, vector<128x128xf32>, vector<1x128xf32> -> vector<1x128xf32>
    %14 = arith.addf %13, %12 : vector<1x128xf32>
    %15 = arith.subf %3, %9 : vector<1x128xf32>
    %16 = arith.mulf %14, %4 : vector<1x128xf32>
    %17 = arith.addf %15, %16 : vector<1x128xf32>
    %18 = arith.mulf %17, %5 : vector<1x128xf32>
    %19 = arith.addf %9, %18 : vector<1x128xf32>
    %cst_14 = arith.constant 3.000000e+01 : f32
    %20 = vector.broadcast %cst_14 : f32 to vector<1x128xf32>
    %21 = arith.subf %19, %20 : vector<1x128xf32>
    %22 = arith.negf %21 : vector<1x128xf32>
    %23 = math.exp %22 : vector<1x128xf32>
    %cst_15 = arith.constant 1.000000e+00 : f32
    %24 = vector.broadcast %cst_15 : f32 to vector<1x128xf32>
    %25 = arith.addf %24, %23 : vector<1x128xf32>
    %26 = arith.divf %24, %25 : vector<1x128xf32>
    %cst_16 = arith.constant 3.000000e+01 : f32
    %27 = vector.broadcast %cst_16 : f32 to vector<1x128xf32>
    %28 = arith.cmpf oge, %19, %27 : vector<1x128xf32>
    %29 = arith.select %28, %3, %19 : vector<1x128xi1>, vector<1x128xf32>
    %30 = arith.mulf %10, %6 : vector<1x128xf32>
    %31 = arith.select %28, %7, %30 : vector<1x128xi1>, vector<1x128xf32>
    %32 = arith.index_cast %c0_i32_11 : i32 to index
    %c0_17 = arith.constant 0 : index
    %33 = vector.load %arg4[%32, %c0_17] : memref<8x128xf32, #tpu.memory_space<vmem>>, vector<1x128xf32>
    tpu.vector_store %arg4[%32, %c0_17], %29 {strides = array<i32>} : memref<8x128xf32, #tpu.memory_space<vmem>>, vector<1x128xf32>,
    %34 = arith.index_cast %c0_i32_11 : i32 to index
    %c0_18 = arith.constant 0 : index
    %35 = vector.load %arg5[%34, %c0_18] : memref<8x128xf32, #tpu.memory_space<vmem>>, vector<1x128xf32>
    tpu.vector_store %arg5[%34, %c0_18], %26 {strides = array<i32>} : memref<8x128xf32, #tpu.memory_space<vmem>>, vector<1x128xf32>,
    %36 = arith.index_cast %c0_i32_11 : i32 to index
    %c0_19 = arith.constant 0 : index
    %37 = vector.load %arg6[%36, %c0_19] : memref<8x128xf32, #tpu.memory_space<vmem>>, vector<1x128xf32>
    tpu.vector_store %arg6[%36, %c0_19], %31 {strides = array<i32>} : memref<8x128xf32, #tpu.memory_space<vmem>>, vector<1x128xf32>,
    %c1_i32 = arith.constant 1 : i32
    %38 = arith.index_cast %c1_i32 : i32 to index
    %c0_20 = arith.constant 0 : index
    %39 = vector.load %arg3[%38, %c0_20] : memref<8x128xf32, #tpu.memory_space<vmem>>, vector<1x128xf32>
    %cst_21 = arith.constant dense<0.000000e+00> : vector<1x128xf32>
    %40 = tpu.matmul %31, %8, %cst_21 {dimension_numbers = #tpu.dot_dimension_numbers<[1], [0], [0], [1], [0, 0, 1, 1], [], []>} : vector<1x128xf32>, vector<128x128xf32>, vector<1x128xf32> -> vector<1x128xf32>
    %41 = arith.addf %40, %39 : vector<1x128xf32>
    %42 = arith.subf %3, %29 : vector<1x128xf32>
    %43 = arith.mulf %41, %4 : vector<1x128xf32>
    %44 = arith.addf %42, %43 : vector<1x128xf32>
    %45 = arith.mulf %44, %5 : vector<1x128xf32>
    %46 = arith.addf %29, %45 : vector<1x128xf32>
    %cst_22 = arith.constant 3.000000e+01 : f32
    %47 = vector.broadcast %cst_22 : f32 to vector<1x128xf32>
    %48 = arith.subf %46, %47 : vector<1x128xf32>
    %49 = arith.negf %48 : vector<1x128xf32>
    %50 = math.exp %49 : vector<1x128xf32>
    %cst_23 = arith.constant 1.000000e+00 : f32
    %51 = vector.broadcast %cst_23 : f32 to vector<1x128xf32>
    %52 = arith.addf %51, %50 : vector<1x128xf32>
    %53 = arith.divf %51, %52 : vector<1x128xf32>
    %cst_24 = arith.constant 3.000000e+01 : f32
    %54 = vector.broadcast %cst_24 : f32 to vector<1x128xf32>
    %55 = arith.cmpf oge, %46, %54 : vector<1x128xf32>
    %56 = arith.select %55, %3, %46 : vector<1x128xi1>, vector<1x128xf32>
    %57 = arith.mulf %31, %6 : vector<1x128xf32>
    %58 = arith.select %55, %7, %57 : vector<1x128xi1>, vector<1x128xf32>
    %59 = arith.index_cast %c1_i32 : i32 to index
    %c0_25 = arith.constant 0 : index
    %60 = vector.load %arg4[%59, %c0_25] : memref<8x128xf32, #tpu.memory_space<vmem>>, vector<1x128xf32>
    tpu.vector_store %arg4[%59, %c0_25], %56 {strides = array<i32>} : memref<8x128xf32, #tpu.memory_space<vmem>>, vector<1x128xf32>,
    %61 = arith.index_cast %c1_i32 : i32 to index
    %c0_26 = arith.constant 0 : index
    %62 = vector.load %arg5[%61, %c0_26] : memref<8x128xf32, #tpu.memory_space<vmem>>, vector<1x128xf32>
    tpu.vector_store %arg5[%61, %c0_26], %53 {strides = array<i32>} : memref<8x128xf32, #tpu.memory_space<vmem>>, vector<1x128xf32>,
    %63 = arith.index_cast %c1_i32 : i32 to index
    %c0_27 = arith.constant 0 : index
    %64 = vector.load %arg6[%63, %c0_27] : memref<8x128xf32, #tpu.memory_space<vmem>>, vector<1x128xf32>
    tpu.vector_store %arg6[%63, %c0_27], %58 {strides = array<i32>} : memref<8x128xf32, #tpu.memory_space<vmem>>, vector<1x128xf32>,
    %c2_i32 = arith.constant 2 : i32
    %65 = arith.index_cast %c2_i32 : i32 to index
    %c0_28 = arith.constant 0 : index
    %66 = vector.load %arg3[%65, %c0_28] : memref<8x128xf32, #tpu.memory_space<vmem>>, vector<1x128xf32>
    %cst_29 = arith.constant dense<0.000000e+00> : vector<1x128xf32>
    %67 = tpu.matmul %58, %8, %cst_29 {dimension_numbers = #tpu.dot_dimension_numbers<[1], [0], [0], [1], [0, 0, 1, 1], [], []>} : vector<1x128xf32>, vector<128x128xf32>, vector<1x128xf32> -> vector<1x128xf32>
    %68 = arith.addf %67, %66 : vector<1x128xf32>
    %69 = arith.subf %3, %56 : vector<1x128xf32>
    %70 = arith.mulf %68, %4 : vector<1x128xf32>
    %71 = arith.addf %69, %70 : vector<1x128xf32>
    %72 = arith.mulf %71, %5 : vector<1x128xf32>
    %73 = arith.addf %56, %72 : vector<1x128xf32>
    %cst_30 = arith.constant 3.000000e+01 : f32
    %74 = vector.broadcast %cst_30 : f32 to vector<1x128xf32>
    %75 = arith.subf %73, %74 : vector<1x128xf32>
    %76 = arith.negf %75 : vector<1x128xf32>
    %77 = math.exp %76 : vector<1x128xf32>
    %cst_31 = arith.constant 1.000000e+00 : f32
    %78 = vector.broadcast %cst_31 : f32 to vector<1x128xf32>
    %79 = arith.addf %78, %77 : vector<1x128xf32>
    %80 = arith.divf %78, %79 : vector<1x128xf32>
    %cst_32 = arith.constant 3.000000e+01 : f32
    %81 = vector.broadcast %cst_32 : f32 to vector<1x128xf32>
    %82 = arith.cmpf oge, %73, %81 : vector<1x128xf32>
    %83 = arith.select %82, %3, %73 : vector<1x128xi1>, vector<1x128xf32>
    %84 = arith.mulf %58, %6 : vector<1x128xf32>
    %85 = arith.select %82, %7, %84 : vector<1x128xi1>, vector<1x128xf32>
    %86 = arith.index_cast %c2_i32 : i32 to index
    %c0_33 = arith.constant 0 : index
    %87 = vector.load %arg4[%86, %c0_33] : memref<8x128xf32, #tpu.memory_space<vmem>>, vector<1x128xf32>
    tpu.vector_store %arg4[%86, %c0_33], %83 {strides = array<i32>} : memref<8x128xf32, #tpu.memory_space<vmem>>, vector<1x128xf32>,
    %88 = arith.index_cast %c2_i32 : i32 to index
    %c0_34 = arith.constant 0 : index
    %89 = vector.load %arg5[%88, %c0_34] : memref<8x128xf32, #tpu.memory_space<vmem>>, vector<1x128xf32>
    tpu.vector_store %arg5[%88, %c0_34], %80 {strides = array<i32>} : memref<8x128xf32, #tpu.memory_space<vmem>>, vector<1x128xf32>,
    %90 = arith.index_cast %c2_i32 : i32 to index
    %c0_35 = arith.constant 0 : index
    %91 = vector.load %arg6[%90, %c0_35] : memref<8x128xf32, #tpu.memory_space<vmem>>, vector<1x128xf32>
    tpu.vector_store %arg6[%90, %c0_35], %85 {strides = array<i32>} : memref<8x128xf32, #tpu.memory_space<vmem>>, vector<1x128xf32>,
    %c3_i32 = arith.constant 3 : i32
    %92 = arith.index_cast %c3_i32 : i32 to index
    %c0_36 = arith.constant 0 : index
    %93 = vector.load %arg3[%92, %c0_36] : memref<8x128xf32, #tpu.memory_space<vmem>>, vector<1x128xf32>
    %cst_37 = arith.constant dense<0.000000e+00> : vector<1x128xf32>
    %94 = tpu.matmul %85, %8, %cst_37 {dimension_numbers = #tpu.dot_dimension_numbers<[1], [0], [0], [1], [0, 0, 1, 1], [], []>} : vector<1x128xf32>, vector<128x128xf32>, vector<1x128xf32> -> vector<1x128xf32>
    %95 = arith.addf %94, %93 : vector<1x128xf32>
    %96 = arith.subf %3, %83 : vector<1x128xf32>
    %97 = arith.mulf %95, %4 : vector<1x128xf32>
    %98 = arith.addf %96, %97 : vector<1x128xf32>
    %99 = arith.mulf %98, %5 : vector<1x128xf32>
    %100 = arith.addf %83, %99 : vector<1x128xf32>
    %cst_38 = arith.constant 3.000000e+01 : f32
    %101 = vector.broadcast %cst_38 : f32 to vector<1x128xf32>
    %102 = arith.subf %100, %101 : vector<1x128xf32>
    %103 = arith.negf %102 : vector<1x128xf32>
    %104 = math.exp %103 : vector<1x128xf32>
    %cst_39 = arith.constant 1.000000e+00 : f32
    %105 = vector.broadcast %cst_39 : f32 to vector<1x128xf32>
    %106 = arith.addf %105, %104 : vector<1x128xf32>
    %107 = arith.divf %105, %106 : vector<1x128xf32>
    %cst_40 = arith.constant 3.000000e+01 : f32
    %108 = vector.broadcast %cst_40 : f32 to vector<1x128xf32>
    %109 = arith.cmpf oge, %100, %108 : vector<1x128xf32>
    %110 = arith.select %109, %3, %100 : vector<1x128xi1>, vector<1x128xf32>
    %111 = arith.mulf %85, %6 : vector<1x128xf32>
    %112 = arith.select %109, %7, %111 : vector<1x128xi1>, vector<1x128xf32>
    %113 = arith.index_cast %c3_i32 : i32 to index
    %c0_41 = arith.constant 0 : index
    %114 = vector.load %arg4[%113, %c0_41] : memref<8x128xf32, #tpu.memory_space<vmem>>, vector<1x128xf32>
    tpu.vector_store %arg4[%113, %c0_41], %110 {strides = array<i32>} : memref<8x128xf32, #tpu.memory_space<vmem>>, vector<1x128xf32>,
    %115 = arith.index_cast %c3_i32 : i32 to index
    %c0_42 = arith.constant 0 : index
    %116 = vector.load %arg5[%115, %c0_42] : memref<8x128xf32, #tpu.memory_space<vmem>>, vector<1x128xf32>
    tpu.vector_store %arg5[%115, %c0_42], %107 {strides = array<i32>} : memref<8x128xf32, #tpu.memory_space<vmem>>, vector<1x128xf32>,
    %117 = arith.index_cast %c3_i32 : i32 to index
    %c0_43 = arith.constant 0 : index
    %118 = vector.load %arg6[%117, %c0_43] : memref<8x128xf32, #tpu.memory_space<vmem>>, vector<1x128xf32>
    tpu.vector_store %arg6[%117, %c0_43], %112 {strides = array<i32>} : memref<8x128xf32, #tpu.memory_space<vmem>>, vector<1x128xf32>,
    %c4_i32 = arith.constant 4 : i32
    %119 = arith.index_cast %c4_i32 : i32 to index
    %c0_44 = arith.constant 0 : index
    %120 = vector.load %arg3[%119, %c0_44] : memref<8x128xf32, #tpu.memory_space<vmem>>, vector<1x128xf32>
    %cst_45 = arith.constant dense<0.000000e+00> : vector<1x128xf32>
    %121 = tpu.matmul %112, %8, %cst_45 {dimension_numbers = #tpu.dot_dimension_numbers<[1], [0], [0], [1], [0, 0, 1, 1], [], []>} : vector<1x128xf32>, vector<128x128xf32>, vector<1x128xf32> -> vector<1x128xf32>
    %122 = arith.addf %121, %120 : vector<1x128xf32>
    %123 = arith.subf %3, %110 : vector<1x128xf32>
    %124 = arith.mulf %122, %4 : vector<1x128xf32>
    %125 = arith.addf %123, %124 : vector<1x128xf32>
    %126 = arith.mulf %125, %5 : vector<1x128xf32>
    %127 = arith.addf %110, %126 : vector<1x128xf32>
    %cst_46 = arith.constant 3.000000e+01 : f32
    %128 = vector.broadcast %cst_46 : f32 to vector<1x128xf32>
    %129 = arith.subf %127, %128 : vector<1x128xf32>
    %130 = arith.negf %129 : vector<1x128xf32>
    %131 = math.exp %130 : vector<1x128xf32>
    %cst_47 = arith.constant 1.000000e+00 : f32
    %132 = vector.broadcast %cst_47 : f32 to vector<1x128xf32>
    %133 = arith.addf %132, %131 : vector<1x128xf32>
    %134 = arith.divf %132, %133 : vector<1x128xf32>
    %cst_48 = arith.constant 3.000000e+01 : f32
    %135 = vector.broadcast %cst_48 : f32 to vector<1x128xf32>
    %136 = arith.cmpf oge, %127, %135 : vector<1x128xf32>
    %137 = arith.select %136, %3, %127 : vector<1x128xi1>, vector<1x128xf32>
    %138 = arith.mulf %112, %6 : vector<1x128xf32>
    %139 = arith.select %136, %7, %138 : vector<1x128xi1>, vector<1x128xf32>
    %140 = arith.index_cast %c4_i32 : i32 to index
    %c0_49 = arith.constant 0 : index
    %141 = vector.load %arg4[%140, %c0_49] : memref<8x128xf32, #tpu.memory_space<vmem>>, vector<1x128xf32>
    tpu.vector_store %arg4[%140, %c0_49], %137 {strides = array<i32>} : memref<8x128xf32, #tpu.memory_space<vmem>>, vector<1x128xf32>,
    %142 = arith.index_cast %c4_i32 : i32 to index
    %c0_50 = arith.constant 0 : index
    %143 = vector.load %arg5[%142, %c0_50] : memref<8x128xf32, #tpu.memory_space<vmem>>, vector<1x128xf32>
    tpu.vector_store %arg5[%142, %c0_50], %134 {strides = array<i32>} : memref<8x128xf32, #tpu.memory_space<vmem>>, vector<1x128xf32>,
    %144 = arith.index_cast %c4_i32 : i32 to index
    %c0_51 = arith.constant 0 : index
    %145 = vector.load %arg6[%144, %c0_51] : memref<8x128xf32, #tpu.memory_space<vmem>>, vector<1x128xf32>
    tpu.vector_store %arg6[%144, %c0_51], %139 {strides = array<i32>} : memref<8x128xf32, #tpu.memory_space<vmem>>, vector<1x128xf32>,
    %c5_i32 = arith.constant 5 : i32
    %146 = arith.index_cast %c5_i32 : i32 to index
    %c0_52 = arith.constant 0 : index
    %147 = vector.load %arg3[%146, %c0_52] : memref<8x128xf32, #tpu.memory_space<vmem>>, vector<1x128xf32>
    %cst_53 = arith.constant dense<0.000000e+00> : vector<1x128xf32>
    %148 = tpu.matmul %139, %8, %cst_53 {dimension_numbers = #tpu.dot_dimension_numbers<[1], [0], [0], [1], [0, 0, 1, 1], [], []>} : vector<1x128xf32>, vector<128x128xf32>, vector<1x128xf32> -> vector<1x128xf32>
    %149 = arith.addf %148, %147 : vector<1x128xf32>
    %150 = arith.subf %3, %137 : vector<1x128xf32>
    %151 = arith.mulf %149, %4 : vector<1x128xf32>
    %152 = arith.addf %150, %151 : vector<1x128xf32>
    %153 = arith.mulf %152, %5 : vector<1x128xf32>
    %154 = arith.addf %137, %153 : vector<1x128xf32>
    %cst_54 = arith.constant 3.000000e+01 : f32
    %155 = vector.broadcast %cst_54 : f32 to vector<1x128xf32>
    %156 = arith.subf %154, %155 : vector<1x128xf32>
    %157 = arith.negf %156 : vector<1x128xf32>
    %158 = math.exp %157 : vector<1x128xf32>
    %cst_55 = arith.constant 1.000000e+00 : f32
    %159 = vector.broadcast %cst_55 : f32 to vector<1x128xf32>
    %160 = arith.addf %159, %158 : vector<1x128xf32>
    %161 = arith.divf %159, %160 : vector<1x128xf32>
    %cst_56 = arith.constant 3.000000e+01 : f32
    %162 = vector.broadcast %cst_56 : f32 to vector<1x128xf32>
    %163 = arith.cmpf oge, %154, %162 : vector<1x128xf32>
    %164 = arith.select %163, %3, %154 : vector<1x128xi1>, vector<1x128xf32>
    %165 = arith.mulf %139, %6 : vector<1x128xf32>
    %166 = arith.select %163, %7, %165 : vector<1x128xi1>, vector<1x128xf32>
    %167 = arith.index_cast %c5_i32 : i32 to index
    %c0_57 = arith.constant 0 : index
    %168 = vector.load %arg4[%167, %c0_57] : memref<8x128xf32, #tpu.memory_space<vmem>>, vector<1x128xf32>
    tpu.vector_store %arg4[%167, %c0_57], %164 {strides = array<i32>} : memref<8x128xf32, #tpu.memory_space<vmem>>, vector<1x128xf32>,
    %169 = arith.index_cast %c5_i32 : i32 to index
    %c0_58 = arith.constant 0 : index
    %170 = vector.load %arg5[%169, %c0_58] : memref<8x128xf32, #tpu.memory_space<vmem>>, vector<1x128xf32>
    tpu.vector_store %arg5[%169, %c0_58], %161 {strides = array<i32>} : memref<8x128xf32, #tpu.memory_space<vmem>>, vector<1x128xf32>,
    %171 = arith.index_cast %c5_i32 : i32 to index
    %c0_59 = arith.constant 0 : index
    %172 = vector.load %arg6[%171, %c0_59] : memref<8x128xf32, #tpu.memory_space<vmem>>, vector<1x128xf32>
    tpu.vector_store %arg6[%171, %c0_59], %166 {strides = array<i32>} : memref<8x128xf32, #tpu.memory_space<vmem>>, vector<1x128xf32>,
    %c6_i32 = arith.constant 6 : i32
    %173 = arith.index_cast %c6_i32 : i32 to index
    %c0_60 = arith.constant 0 : index
    %174 = vector.load %arg3[%173, %c0_60] : memref<8x128xf32, #tpu.memory_space<vmem>>, vector<1x128xf32>
    %cst_61 = arith.constant dense<0.000000e+00> : vector<1x128xf32>
    %175 = tpu.matmul %166, %8, %cst_61 {dimension_numbers = #tpu.dot_dimension_numbers<[1], [0], [0], [1], [0, 0, 1, 1], [], []>} : vector<1x128xf32>, vector<128x128xf32>, vector<1x128xf32> -> vector<1x128xf32>
    %176 = arith.addf %175, %174 : vector<1x128xf32>
    %177 = arith.subf %3, %164 : vector<1x128xf32>
    %178 = arith.mulf %176, %4 : vector<1x128xf32>
    %179 = arith.addf %177, %178 : vector<1x128xf32>
    %180 = arith.mulf %179, %5 : vector<1x128xf32>
    %181 = arith.addf %164, %180 : vector<1x128xf32>
    %cst_62 = arith.constant 3.000000e+01 : f32
    %182 = vector.broadcast %cst_62 : f32 to vector<1x128xf32>
    %183 = arith.subf %181, %182 : vector<1x128xf32>
    %184 = arith.negf %183 : vector<1x128xf32>
    %185 = math.exp %184 : vector<1x128xf32>
    %cst_63 = arith.constant 1.000000e+00 : f32
    %186 = vector.broadcast %cst_63 : f32 to vector<1x128xf32>
    %187 = arith.addf %186, %185 : vector<1x128xf32>
    %188 = arith.divf %186, %187 : vector<1x128xf32>
    %cst_64 = arith.constant 3.000000e+01 : f32
    %189 = vector.broadcast %cst_64 : f32 to vector<1x128xf32>
    %190 = arith.cmpf oge, %181, %189 : vector<1x128xf32>
    %191 = arith.select %190, %3, %181 : vector<1x128xi1>, vector<1x128xf32>
    %192 = arith.mulf %166, %6 : vector<1x128xf32>
    %193 = arith.select %190, %7, %192 : vector<1x128xi1>, vector<1x128xf32>
    %194 = arith.index_cast %c6_i32 : i32 to index
    %c0_65 = arith.constant 0 : index
    %195 = vector.load %arg4[%194, %c0_65] : memref<8x128xf32, #tpu.memory_space<vmem>>, vector<1x128xf32>
    tpu.vector_store %arg4[%194, %c0_65], %191 {strides = array<i32>} : memref<8x128xf32, #tpu.memory_space<vmem>>, vector<1x128xf32>,
    %196 = arith.index_cast %c6_i32 : i32 to index
    %c0_66 = arith.constant 0 : index
    %197 = vector.load %arg5[%196, %c0_66] : memref<8x128xf32, #tpu.memory_space<vmem>>, vector<1x128xf32>
    tpu.vector_store %arg5[%196, %c0_66], %188 {strides = array<i32>} : memref<8x128xf32, #tpu.memory_space<vmem>>, vector<1x128xf32>,
    %198 = arith.index_cast %c6_i32 : i32 to index
    %c0_67 = arith.constant 0 : index
    %199 = vector.load %arg6[%198, %c0_67] : memref<8x128xf32, #tpu.memory_space<vmem>>, vector<1x128xf32>
    tpu.vector_store %arg6[%198, %c0_67], %193 {strides = array<i32>} : memref<8x128xf32, #tpu.memory_space<vmem>>, vector<1x128xf32>,
    %c7_i32 = arith.constant 7 : i32
    %200 = arith.index_cast %c7_i32 : i32 to index
    %c0_68 = arith.constant 0 : index
    %201 = vector.load %arg3[%200, %c0_68] : memref<8x128xf32, #tpu.memory_space<vmem>>, vector<1x128xf32>
    %cst_69 = arith.constant dense<0.000000e+00> : vector<1x128xf32>
    %202 = tpu.matmul %193, %8, %cst_69 {dimension_numbers = #tpu.dot_dimension_numbers<[1], [0], [0], [1], [0, 0, 1, 1], [], []>} : vector<1x128xf32>, vector<128x128xf32>, vector<1x128xf32> -> vector<1x128xf32>
    %203 = arith.addf %202, %201 : vector<1x128xf32>
    %204 = arith.subf %3, %191 : vector<1x128xf32>
    %205 = arith.mulf %203, %4 : vector<1x128xf32>
    %206 = arith.addf %204, %205 : vector<1x128xf32>
    %207 = arith.mulf %206, %5 : vector<1x128xf32>
    %208 = arith.addf %191, %207 : vector<1x128xf32>
    %cst_70 = arith.constant 3.000000e+01 : f32
    %209 = vector.broadcast %cst_70 : f32 to vector<1x128xf32>
    %210 = arith.subf %208, %209 : vector<1x128xf32>
    %211 = arith.negf %210 : vector<1x128xf32>
    %212 = math.exp %211 : vector<1x128xf32>
    %cst_71 = arith.constant 1.000000e+00 : f32
    %213 = vector.broadcast %cst_71 : f32 to vector<1x128xf32>
    %214 = arith.addf %213, %212 : vector<1x128xf32>
    %215 = arith.divf %213, %214 : vector<1x128xf32>
    %cst_72 = arith.constant 3.000000e+01 : f32
    %216 = vector.broadcast %cst_72 : f32 to vector<1x128xf32>
    %217 = arith.cmpf oge, %208, %216 : vector<1x128xf32>
    %218 = arith.select %217, %3, %208 : vector<1x128xi1>, vector<1x128xf32>
    %219 = arith.mulf %193, %6 : vector<1x128xf32>
    %220 = arith.select %217, %7, %219 : vector<1x128xi1>, vector<1x128xf32>
    %221 = arith.index_cast %c7_i32 : i32 to index
    %c0_73 = arith.constant 0 : index
    %222 = vector.load %arg4[%221, %c0_73] : memref<8x128xf32, #tpu.memory_space<vmem>>, vector<1x128xf32>
    tpu.vector_store %arg4[%221, %c0_73], %218 {strides = array<i32>} : memref<8x128xf32, #tpu.memory_space<vmem>>, vector<1x128xf32>,
    %223 = arith.index_cast %c7_i32 : i32 to index
    %c0_74 = arith.constant 0 : index
    %224 = vector.load %arg5[%223, %c0_74] : memref<8x128xf32, #tpu.memory_space<vmem>>, vector<1x128xf32>
    tpu.vector_store %arg5[%223, %c0_74], %215 {strides = array<i32>} : memref<8x128xf32, #tpu.memory_space<vmem>>, vector<1x128xf32>,
    %225 = arith.index_cast %c7_i32 : i32 to index
    %c0_75 = arith.constant 0 : index
    %226 = vector.load %arg6[%225, %c0_75] : memref<8x128xf32, #tpu.memory_space<vmem>>, vector<1x128xf32>
    tpu.vector_store %arg6[%225, %c0_75], %220 {strides = array<i32>} : memref<8x128xf32, #tpu.memory_space<vmem>>, vector<1x128xf32>,
    %c8_i32 = arith.constant 8 : i32
    %c0_76 = arith.constant 0 : index
    %c0_77 = arith.constant 0 : index
    %227 = vector.load %arg7[%c0_76, %c0_77] : memref<1x128xf32, #tpu.memory_space<vmem>>, vector<1x128xf32>
    tpu.vector_store %arg7[%c0_76, %c0_77], %218 {strides = array<i32>} : memref<1x128xf32, #tpu.memory_space<vmem>>, vector<1x128xf32>,
    %c0_78 = arith.constant 0 : index
    %c0_79 = arith.constant 0 : index
    %228 = vector.load %arg8[%c0_78, %c0_79] : memref<1x128xf32, #tpu.memory_space<vmem>>, vector<1x128xf32>
    tpu.vector_store %arg8[%c0_78, %c0_79], %220 {strides = array<i32>} : memref<1x128xf32, #tpu.memory_space<vmem>>, vector<1x128xf32>,
    return
  }
  func.func @transform_0(%arg0: i32) -> (i32, i32) {
    %c0_i32 = arith.constant 0 : i32
    %c0_i32_0 = arith.constant 0 : i32
    %c0_i32_1 = arith.constant 0 : i32
    return %c0_i32, %c0_i32_0 : i32, i32
  }
  func.func @transform_1(%arg0: i32) -> (i32, i32) {
    %c0_i32 = arith.constant 0 : i32
    %c0_i32_0 = arith.constant 0 : i32
    %c0_i32_1 = arith.constant 0 : i32
    return %c0_i32, %c0_i32_0 : i32, i32
  }
  func.func @transform_2(%arg0: i32) -> (i32, i32) {
    %c0_i32 = arith.constant 0 : i32
    %c0_i32_0 = arith.constant 0 : i32
    return %arg0, %c0_i32 : i32, i32
  }
  func.func @transform_3(%arg0: i32) -> (i32, i32) {
    %c0_i32 = arith.constant 0 : i32
    %c0_i32_0 = arith.constant 0 : i32
    return %arg0, %c0_i32 : i32, i32
  }
  func.func @transform_4(%arg0: i32) -> (i32, i32) {
    %c0_i32 = arith.constant 0 : i32
    %c0_i32_0 = arith.constant 0 : i32
    return %arg0, %c0_i32 : i32, i32
  }
  func.func @transform_5(%arg0: i32) -> (i32, i32) {
    %c0_i32 = arith.constant 0 : i32
    %c0_i32_0 = arith.constant 0 : i32
    return %arg0, %c0_i32 : i32, i32
  }
}

</mosaic_0001>

<llo_original>
// kernel: tpu_custom_call.1
$region0: #{tpu_custom_call.1}
  #allocation0 [shape = 'u32[]', space=smem, size = 0x4, offset = 0x4, fixed_abs, tag = 'smem constant byte address 0x4 - core index']
  #allocation1 [shape = 'u32[144,128]{1,0:T(1,128)}', space=vmem, size = 0x12000, scoped, tag = 'internal scratch']
  #allocation2 [shape = 'f32[1,128]{1,0:T(1,128)}', space=vmem, size = 0x200, scoped, tag = 'scratch operand']
  #allocation3 [shape = 'f32[1,128]{1,0:T(1,128)}', space=vmem, size = 0x200, scoped, tag = 'scratch operand']
  %s0 = inlined_call_operand.hbm [shape: f32[8,128], index: 0, kind: input, shape index: {}]
  %s1 = inlined_call_operand.hbm [shape: f32[128,128], index: 1, kind: input, shape index: {}]
  %s2 = inlined_call_operand.hbm [shape: f32[8,128], index: 2, kind: input, shape index: {}]
  %s3 = inlined_call_operand.hbm [shape: f32[8,128], index: 3, kind: output, shape index: {0}]
  %s4 = inlined_call_operand.hbm [shape: f32[8,128], index: 4, kind: output, shape index: {1}]
  %s5 = inlined_call_operand.hbm [shape: f32[8,128], index: 5, kind: output, shape index: {2}]
  %6 = xla_tuple %s3, %s4, %s5
  %s7 = sld [smem:[#allocation0]]
  $region54: #{tpu_custom_call.1} parent=0
    _
  %s9 = ssub.s32 1, %s7
  %s10 = scalar_select 0, %s9, %s7
  $region1: #{tpu_custom_call.1} parent=0
    #allocation4 [shape = 'u8[4096]{0}', space=vmem, size = 0x1000, scoped, tag = 'input window, operand 0, single buffered']
    #allocation5 [shape = 's32[1]{0}', space=sflag, size = 0x4, scoped, tag = 'scoped memory for tpu_custom_call.1']
    #allocation6 [shape = 's32[1]{0}', space=sflag, size = 0x4, scoped, tag = 'scoped memory for tpu_custom_call.1']
    #allocation7 [shape = 'u8[65536]{0}', space=vmem, size = 0x10000, scoped, tag = 'input window, operand 1, single buffered']
    #allocation8 [shape = 's32[1]{0}', space=sflag, size = 0x4, scoped, tag = 'scoped memory for tpu_custom_call.1']
    #allocation9 [shape = 'u8[4096]{0}', space=vmem, size = 0x1000, scoped, tag = 'input window, operand 2, single buffered']
    #allocation10 [shape = 'u8[4096]{0}', space=vmem, size = 0x1000, scoped, tag = 'output window, operand 0, single buffered']
    #allocation11 [shape = 'u8[4096]{0}', space=vmem, size = 0x1000, scoped, tag = 'output window, operand 1, single buffered']
    #allocation12 [shape = 's32[1]{0}', space=sflag, size = 0x4, scoped, tag = 'scoped memory for tpu_custom_call.1']
    #allocation13 [shape = 'u8[4096]{0}', space=vmem, size = 0x1000, scoped, tag = 'output window, operand 2, single buffered']
    %11 = vsyncpa [#allocation5], 0
    %12 = vsyncpa [#allocation8], 0
    %13 = vsyncpa [#allocation6], 0
    %14 = vsyncpa [#allocation12], 0
    // Predicated region
    $region2: #{tpu_custom_call.1} parent=1 // pred_check
      _
    $region3: #{tpu_custom_call.1} parent=1 // pred_check_branch
      %16 = sbr.rel (0) target = $region5
    $region4: #{tpu_custom_call.1} parent=1 // pred_region
      %s18 = ssub.s32 128, 128
      %19 = vsyncadd [#allocation5], %s18
      %s21 = sshll.u32 [#allocation4], 4
      %s22 = int_to_ptr.vmem [resolvable:$true] %s21
      %24 = dma.hbm_to_vmem [thread:$0]  %s0, 128, %s22, [#allocation5]
    $region5: #{tpu_custom_call.1} parent=1 // pred_fallthru
      _
    // Predicated region
    $region6: #{tpu_custom_call.1} parent=1 // pred_check
      _
    $region7: #{tpu_custom_call.1} parent=1 // pred_check_branch
      %26 = sbr.rel (0) target = $region9
    $region8: #{tpu_custom_call.1} parent=1 // pred_region
      %s28 = ssub.s32 2048, 2048
      %29 = vsyncadd [#allocation8], %s28
      %s30 = sshll.u32 [#allocation7], 4
      %s31 = int_to_ptr.vmem [resolvable:$true] %s30
      %36 = dma.hbm_to_vmem [thread:$0]  %s1, 2048, %s31, [#allocation8], 128, 128, 8
    $region9: #{tpu_custom_call.1} parent=1 // pred_fallthru
      _
    // Predicated region
    $region10: #{tpu_custom_call.1} parent=1 // pred_check
      _
    $region11: #{tpu_custom_call.1} parent=1 // pred_check_branch
      %38 = sbr.rel (0) target = $region13
    $region12: #{tpu_custom_call.1} parent=1 // pred_region
      %s40 = ssub.s32 128, 128
      %41 = vsyncadd [#allocation8], %s40
      %s43 = sshll.u32 [#allocation9], 4
      %s44 = int_to_ptr.vmem [resolvable:$true] %s43
      %46 = dma.hbm_to_vmem [thread:$0]  %s2, 128, %s44, [#allocation8]
    $region13: #{tpu_custom_call.1} parent=1 // pred_fallthru
      _
    // Predicated region
    $region14: #{tpu_custom_call.1} parent=1 // pred_check
      _
    $region15: #{tpu_custom_call.1} parent=1 // pred_check_branch
      %48 = sbr.rel (0) target = $region17
    $region16: #{tpu_custom_call.1} parent=1 // pred_region
      %49 = dma.done [#allocation5], 128
    $region17: #{tpu_custom_call.1} parent=1 // pred_fallthru
      _
    // Predicated region
    $region18: #{tpu_custom_call.1} parent=1 // pred_check
      _
    $region19: #{tpu_custom_call.1} parent=1 // pred_check_branch
      %51 = sbr.rel (0) target = $region21
    $region20: #{tpu_custom_call.1} parent=1 // pred_region
      %52 = dma.done [#allocation8], 2048
    $region21: #{tpu_custom_call.1} parent=1 // pred_fallthru
      _
    // Predicated region
    $region22: #{tpu_custom_call.1} parent=1 // pred_check
      _
    $region23: #{tpu_custom_call.1} parent=1 // pred_check_branch
      %54 = sbr.rel (0) target = $region25
    $region24: #{tpu_custom_call.1} parent=1 // pred_region
      %55 = dma.done [#allocation8], 128
    $region25: #{tpu_custom_call.1} parent=1 // pred_fallthru
      _
    %p56 = scmp.eq.s32.totalorder 0, 0
    // Predicated region
    $region26: #{tpu_custom_call.1} parent=1 // pred_check
      %p57 = pneg %p56
    $region27: #{tpu_custom_call.1} parent=1 // pred_check_branch
      %59 = sbr.rel (%p57) target = $region29
    $region28: #{tpu_custom_call.1} parent=1 // pred_region
      %v60 = vld [vmem:[#allocation4 + $0x4] sm:$0x1]
      %61 = vst [vmem:[#allocation2] sm:$0x1] %v60
      %v62 = vld [vmem:[#allocation4 + $0x5] sm:$0x1]
      %63 = vst [vmem:[#allocation3] sm:$0x1] %v62
    $region29: #{tpu_custom_call.1} parent=1 // pred_fallthru
      _
    %v64 = vld [vmem:[#allocation4] sm:$0x1]
    %v65 = vld [vmem:[#allocation4 + $0x1] sm:$0x1]
    %v66 = vld [vmem:[#allocation4 + $0x2] sm:$0x1]
    %v67 = vld [vmem:[#allocation4 + $0x3] sm:$0x1]
    %v68 = vld [vmem:[#allocation7] sm:$0xff]
    %v69 = vld [vmem:[#allocation7 + $0x8] sm:$0xff]
    %v70 = vld [vmem:[#allocation7 + $0x10] sm:$0xff]
    %v71 = vld [vmem:[#allocation7 + $0x18] sm:$0xff]
    %v72 = vld [vmem:[#allocation7 + $0x20] sm:$0xff]
    %v73 = vld [vmem:[#allocation7 + $0x28] sm:$0xff]
    %v74 = vld [vmem:[#allocation7 + $0x30] sm:$0xff]
    %v75 = vld [vmem:[#allocation7 + $0x38] sm:$0xff]
    %v76 = vld [vmem:[#allocation7 + $0x40] sm:$0xff]
    %v77 = vld [vmem:[#allocation7 + $0x48] sm:$0xff]
    %v78 = vld [vmem:[#allocation7 + $0x50] sm:$0xff]
    %v79 = vld [vmem:[#allocation7 + $0x58] sm:$0xff]
    %v80 = vld [vmem:[#allocation7 + $0x60] sm:$0xff]
    %v81 = vld [vmem:[#allocation7 + $0x68] sm:$0xff]
    %v82 = vld [vmem:[#allocation7 + $0x70] sm:$0xff]
    %v83 = vld [vmem:[#allocation7 + $0x78] sm:$0xff]
    %v84 = vld [vmem:[#allocation2] sm:$0x1]
    %v85 = vld [vmem:[#allocation3] sm:$0x1]
    %v86 = vld [vmem:[#allocation9] sm:$0x1]
    %87 = vmatprep.subr.mxu0 0.0
    %88 = vmatpush1.msra.mxu0 %v68
    %89 = vmatprep.subr.mxu0 0.0
    %90 = vmatpush1.msra.mxu0 %v69
    %91 = vmatprep.subr.mxu0 0.0
    %92 = vmatpush1.msra.mxu0 %v70
    %93 = vmatprep.subr.mxu0 0.0
    %94 = vmatpush1.msra.mxu0 %v71
    %95 = vmatprep.subr.mxu0 0.0
    %96 = vmatpush1.msra.mxu0 %v72
    %97 = vmatprep.subr.mxu0 0.0
    %98 = vmatpush1.msra.mxu0 %v73
    %99 = vmatprep.subr.mxu0 0.0
    %100 = vmatpush1.msra.mxu0 %v74
    %101 = vmatprep.subr.mxu0 0.0
    %102 = vmatpush1.msra.mxu0 %v75
    %103 = vmatprep.subr.mxu0 0.0
    %104 = vmatpush1.msra.mxu0 %v76
    %105 = vmatprep.subr.mxu0 0.0
    %106 = vmatpush1.msra.mxu0 %v77
    %107 = vmatprep.subr.mxu0 0.0
    %108 = vmatpush1.msra.mxu0 %v78
    %109 = vmatprep.subr.mxu0 0.0
    %110 = vmatpush1.msra.mxu0 %v79
    %111 = vmatprep.subr.mxu0 0.0
    %112 = vmatpush1.msra.mxu0 %v80
    %113 = vmatprep.subr.mxu0 0.0
    %114 = vmatpush1.msra.mxu0 %v81
    %115 = vmatprep.subr.mxu0 0.0
    %116 = vmatpush1.msra.mxu0 %v82
    %117 = vmatprep.subr.mxu0 0.0
    %118 = vmatpush1.msra.mxu0 %v83
    %119 = vmatprep.subr.mxu0 0.0
    %120 = vmatpush1.msra.mxu0 0.0
    %121 = vmatprep.subr.mxu0 0.0
    %122 = vmatpush1.msra.mxu0 0.0
    %123 = vmatprep.subr.mxu0 0.0
    %124 = vmatpush1.msra.mxu0 0.0
    %125 = vmatprep.subr.mxu0 0.0
    %126 = vmatpush1.msra.mxu0 0.0
    %127 = vmatprep.subr.mxu0 0.0
    %128 = vmatpush1.msra.mxu0 0.0
    %129 = vmatprep.subr.mxu0 0.0
    %130 = vmatpush1.msra.mxu0 0.0
    %131 = vmatprep.subr.mxu0 0.0
    %132 = vmatpush1.msra.mxu0 0.0
    %133 = vmatprep.subr.mxu0 0.0
    %134 = vmatpush1.msra.mxu0 0.0
    %135 = vmatprep.subr.mxu0 0.0
    %136 = vmatpush1.msra.mxu0 0.0
    %137 = vmatprep.subr.mxu0 0.0
    %138 = vmatpush1.msra.mxu0 0.0
    %139 = vmatprep.subr.mxu0 0.0
    %140 = vmatpush1.msra.mxu0 0.0
    %141 = vmatprep.subr.mxu0 0.0
    %142 = vmatpush1.msra.mxu0 0.0
    %143 = vmatprep.subr.mxu0 0.0
    %144 = vmatpush1.msra.mxu0 0.0
    %145 = vmatprep.subr.mxu0 0.0
    %146 = vmatpush1.msra.mxu0 0.0
    %147 = vmatprep.subr.mxu0 0.0
    %148 = vmatpush1.msra.mxu0 0.0
    %149 = vmatprep.subr.mxu0 0.0
    %150 = vmatpush1.msra.mxu0 0.0
    %151 = vmatprep.mubr.f32.mxu0 0.0
    %152 = vmatmul.mubr.f32.gmra.mrb[0].mxu0 %v85
    %v153 = vpop.f32.mrb[0].mxu0
    %v154 = vadd.f32 %v86, %v153
    %v155 = vpop.f32.mrb[0].mxu0
    %156 = vdwg.mxu0
    %v157 = vsub.f32 %v64, %v84
    %v158 = vmul.f32 %v154, %v65
    %v159 = vadd.f32 %v157, %v158
    %v160 = vmul.f32 %v159, %v66
    %v161 = vadd.f32 %v84, %v160
    %v162 = vsub.f32 %v161, 30.0
    %v163 = vxor.u32 %v162, 2147483648
    %v164 = vmul.f32 %v163, 1.442695
    %v165 = vpow.pop %v164
    %v166 = vadd.f32 %v165, 1.0
    %v167 = vrcp.pop %v166
    %v168 = vmul.f32 1.0, %v167
    %vm169 = vcmp.ge.f32.partialorder %v161, 30.0
    %v170 = vsel %vm169, %v64, %v161
    %v171 = vmul.f32 %v85, %v67
    %v172 = vsel %vm169, 1.0, %v171
    %173 = vst [vmem:[#allocation10] sm:$0x1] %v170
    %174 = vst [vmem:[#allocation11] sm:$0x1] %v168
    %175 = vst [vmem:[#allocation13] sm:$0x1] %v172
    %v176 = vld [vmem:[#allocation9 + $0x1] sm:$0x1]
    %177 = vmatprep.subr.mxu0 0.0
    %178 = vmatpush1.msra.mxu0 %v68
    %179 = vmatprep.subr.mxu0 0.0
    %180 = vmatpush1.msra.mxu0 %v69
    %181 = vmatprep.subr.mxu0 0.0
    %182 = vmatpush1.msra.mxu0 %v70
    %183 = vmatprep.subr.mxu0 0.0
    %184 = vmatpush1.msra.mxu0 %v71
    %185 = vmatprep.subr.mxu0 0.0
    %186 = vmatpush1.msra.mxu0 %v72
    %187 = vmatprep.subr.mxu0 0.0
    %188 = vmatpush1.msra.mxu0 %v73
    %189 = vmatprep.subr.mxu0 0.0
    %190 = vmatpush1.msra.mxu0 %v74
    %191 = vmatprep.subr.mxu0 0.0
    %192 = vmatpush1.msra.mxu0 %v75
    %193 = vmatprep.subr.mxu0 0.0
    %194 = vmatpush1.msra.mxu0 %v76
    %195 = vmatprep.subr.mxu0 0.0
    %196 = vmatpush1.msra.mxu0 %v77
    %197 = vmatprep.subr.mxu0 0.0
    %198 = vmatpush1.msra.mxu0 %v78
    %199 = vmatprep.subr.mxu0 0.0
    %200 = vmatpush1.msra.mxu0 %v79
    %201 = vmatprep.subr.mxu0 0.0
    %202 = vmatpush1.msra.mxu0 %v80
    %203 = vmatprep.subr.mxu0 0.0
    %204 = vmatpush1.msra.mxu0 %v81
    %205 = vmatprep.subr.mxu0 0.0
    %206 = vmatpush1.msra.mxu0 %v82
    %207 = vmatprep.subr.mxu0 0.0
    %208 = vmatpush1.msra.mxu0 %v83
    %209 = vmatprep.subr.mxu0 0.0
    %210 = vmatpush1.msra.mxu0 0.0
    %211 = vmatprep.subr.mxu0 0.0
    %212 = vmatpush1.msra.mxu0 0.0
    %213 = vmatprep.subr.mxu0 0.0
    %214 = vmatpush1.msra.mxu0 0.0
    %215 = vmatprep.subr.mxu0 0.0
    %216 = vmatpush1.msra.mxu0 0.0
    %217 = vmatprep.subr.mxu0 0.0
    %218 = vmatpush1.msra.mxu0 0.0
    %219 = vmatprep.subr.mxu0 0.0
    %220 = vmatpush1.msra.mxu0 0.0
    %221 = vmatprep.subr.mxu0 0.0
    %222 = vmatpush1.msra.mxu0 0.0
    %223 = vmatprep.subr.mxu0 0.0
    %224 = vmatpush1.msra.mxu0 0.0
    %225 = vmatprep.subr.mxu0 0.0
    %226 = vmatpush1.msra.mxu0 0.0
    %227 = vmatprep.subr.mxu0 0.0
    %228 = vmatpush1.msra.mxu0 0.0
    %229 = vmatprep.subr.mxu0 0.0
    %230 = vmatpush1.msra.mxu0 0.0
    %231 = vmatprep.subr.mxu0 0.0
    %232 = vmatpush1.msra.mxu0 0.0
    %233 = vmatprep.subr.mxu0 0.0
    %234 = vmatpush1.msra.mxu0 0.0
    %235 = vmatprep.subr.mxu0 0.0
    %236 = vmatpush1.msra.mxu0 0.0
    %237 = vmatprep.subr.mxu0 0.0
    %238 = vmatpush1.msra.mxu0 0.0
    %239 = vmatprep.subr.mxu0 0.0
    %240 = vmatpush1.msra.mxu0 0.0
    %241 = vmatprep.mubr.f32.mxu0 0.0
    %242 = vmatmul.mubr.f32.gmra.mrb[0].mxu0 %v172
    %v243 = vpop.f32.mrb[0].mxu0
    %v244 = vadd.f32 %v176, %v243
    %v245 = vpop.f32.mrb[0].mxu0
    %246 = vdwg.mxu0
    %v247 = vsub.f32 %v64, %v170
    %v248 = vmul.f32 %v244, %v65
    %v249 = vadd.f32 %v247, %v248
    %v250 = vmul.f32 %v249, %v66
    %v251 = vadd.f32 %v170, %v250
    %v252 = vsub.f32 %v251, 30.0
    %v253 = vxor.u32 %v252, 2147483648
    %v254 = vmul.f32 %v253, 1.442695
    %v255 = vpow.pop %v254
    %v256 = vadd.f32 %v255, 1.0
    %v257 = vrcp.pop %v256
    %v258 = vmul.f32 1.0, %v257
    %vm259 = vcmp.ge.f32.partialorder %v251, 30.0
    %v260 = vsel %vm259, %v64, %v251
    %v261 = vmul.f32 %v172, %v67
    %v262 = vsel %vm259, 1.0, %v261
    %263 = vst [vmem:[#allocation10 + $0x1] sm:$0x1] %v260
    %264 = vst [vmem:[#allocation11 + $0x1] sm:$0x1] %v258
    %265 = vst [vmem:[#allocation13 + $0x1] sm:$0x1] %v262
    %v266 = vld [vmem:[#allocation9 + $0x2] sm:$0x1]
    %267 = vmatprep.subr.mxu0 0.0
    %268 = vmatpush1.msra.mxu0 %v68
    %269 = vmatprep.subr.mxu0 0.0
    %270 = vmatpush1.msra.mxu0 %v69
    %271 = vmatprep.subr.mxu0 0.0
    %272 = vmatpush1.msra.mxu0 %v70
    %273 = vmatprep.subr.mxu0 0.0
    %274 = vmatpush1.msra.mxu0 %v71
    %275 = vmatprep.subr.mxu0 0.0
    %276 = vmatpush1.msra.mxu0 %v72
    %277 = vmatprep.subr.mxu0 0.0
    %278 = vmatpush1.msra.mxu0 %v73
    %279 = vmatprep.subr.mxu0 0.0
    %280 = vmatpush1.msra.mxu0 %v74
    %281 = vmatprep.subr.mxu0 0.0
    %282 = vmatpush1.msra.mxu0 %v75
    %283 = vmatprep.subr.mxu0 0.0
    %284 = vmatpush1.msra.mxu0 %v76
    %285 = vmatprep.subr.mxu0 0.0
    %286 = vmatpush1.msra.mxu0 %v77
    %287 = vmatprep.subr.mxu0 0.0
    %288 = vmatpush1.msra.mxu0 %v78
    %289 = vmatprep.subr.mxu0 0.0
    %290 = vmatpush1.msra.mxu0 %v79
    %291 = vmatprep.subr.mxu0 0.0
    %292 = vmatpush1.msra.mxu0 %v80
    %293 = vmatprep.subr.mxu0 0.0
    %294 = vmatpush1.msra.mxu0 %v81
    %295 = vmatprep.subr.mxu0 0.0
    %296 = vmatpush1.msra.mxu0 %v82
    %297 = vmatprep.subr.mxu0 0.0
    %298 = vmatpush1.msra.mxu0 %v83
    %299 = vmatprep.subr.mxu0 0.0
    %300 = vmatpush1.msra.mxu0 0.0
    %301 = vmatprep.subr.mxu0 0.0
    %302 = vmatpush1.msra.mxu0 0.0
    %303 = vmatprep.subr.mxu0 0.0
    %304 = vmatpush1.msra.mxu0 0.0
    %305 = vmatprep.subr.mxu0 0.0
    %306 = vmatpush1.msra.mxu0 0.0
    %307 = vmatprep.subr.mxu0 0.0
    %308 = vmatpush1.msra.mxu0 0.0
    %309 = vmatprep.subr.mxu0 0.0
    %310 = vmatpush1.msra.mxu0 0.0
    %311 = vmatprep.subr.mxu0 0.0
    %312 = vmatpush1.msra.mxu0 0.0
    %313 = vmatprep.subr.mxu0 0.0
    %314 = vmatpush1.msra.mxu0 0.0
    %315 = vmatprep.subr.mxu0 0.0
    %316 = vmatpush1.msra.mxu0 0.0
    %317 = vmatprep.subr.mxu0 0.0
    %318 = vmatpush1.msra.mxu0 0.0
    %319 = vmatprep.subr.mxu0 0.0
    %320 = vmatpush1.msra.mxu0 0.0
    %321 = vmatprep.subr.mxu0 0.0
    %322 = vmatpush1.msra.mxu0 0.0
    %323 = vmatprep.subr.mxu0 0.0
    %324 = vmatpush1.msra.mxu0 0.0
    %325 = vmatprep.subr.mxu0 0.0
    %326 = vmatpush1.msra.mxu0 0.0
    %327 = vmatprep.subr.mxu0 0.0
    %328 = vmatpush1.msra.mxu0 0.0
    %329 = vmatprep.subr.mxu0 0.0
    %330 = vmatpush1.msra.mxu0 0.0
    %331 = vmatprep.mubr.f32.mxu0 0.0
    %332 = vmatmul.mubr.f32.gmra.mrb[0].mxu0 %v262
    %v333 = vpop.f32.mrb[0].mxu0
    %v334 = vadd.f32 %v266, %v333
    %v335 = vpop.f32.mrb[0].mxu0
    %336 = vdwg.mxu0
    %v337 = vsub.f32 %v64, %v260
    %v338 = vmul.f32 %v334, %v65
    %v339 = vadd.f32 %v337, %v338
    %v340 = vmul.f32 %v339, %v66
    %v341 = vadd.f32 %v260, %v340
    %v342 = vsub.f32 %v341, 30.0
    %v343 = vxor.u32 %v342, 2147483648
    %v344 = vmul.f32 %v343, 1.442695
    %v345 = vpow.pop %v344
    %v346 = vadd.f32 %v345, 1.0
    %v347 = vrcp.pop %v346
    %v348 = vmul.f32 1.0, %v347
    %vm349 = vcmp.ge.f32.partialorder %v341, 30.0
    %v350 = vsel %vm349, %v64, %v341
    %v351 = vmul.f32 %v262, %v67
    %v352 = vsel %vm349, 1.0, %v351
    %353 = vst [vmem:[#allocation10 + $0x2] sm:$0x1] %v350
    %354 = vst [vmem:[#allocation11 + $0x2] sm:$0x1] %v348
    %355 = vst [vmem:[#allocation13 + $0x2] sm:$0x1] %v352
    %v356 = vld [vmem:[#allocation9 + $0x3] sm:$0x1]
    %357 = vmatprep.subr.mxu0 0.0
    %358 = vmatpush1.msra.mxu0 %v68
    %359 = vmatprep.subr.mxu0 0.0
    %360 = vmatpush1.msra.mxu0 %v69
    %361 = vmatprep.subr.mxu0 0.0
    %362 = vmatpush1.msra.mxu0 %v70
    %363 = vmatprep.subr.mxu0 0.0
    %364 = vmatpush1.msra.mxu0 %v71
    %365 = vmatprep.subr.mxu0 0.0
    %366 = vmatpush1.msra.mxu0 %v72
    %367 = vmatprep.subr.mxu0 0.0
    %368 = vmatpush1.msra.mxu0 %v73
    %369 = vmatprep.subr.mxu0 0.0
    %370 = vmatpush1.msra.mxu0 %v74
    %371 = vmatprep.subr.mxu0 0.0
    %372 = vmatpush1.msra.mxu0 %v75
    %373 = vmatprep.subr.mxu0 0.0
    %374 = vmatpush1.msra.mxu0 %v76
    %375 = vmatprep.subr.mxu0 0.0
    %376 = vmatpush1.msra.mxu0 %v77
    %377 = vmatprep.subr.mxu0 0.0
    %378 = vmatpush1.msra.mxu0 %v78
    %379 = vmatprep.subr.mxu0 0.0
    %380 = vmatpush1.msra.mxu0 %v79
    %381 = vmatprep.subr.mxu0 0.0
    %382 = vmatpush1.msra.mxu0 %v80
    %383 = vmatprep.subr.mxu0 0.0
    %384 = vmatpush1.msra.mxu0 %v81
    %385 = vmatprep.subr.mxu0 0.0
    %386 = vmatpush1.msra.mxu0 %v82
    %387 = vmatprep.subr.mxu0 0.0
    %388 = vmatpush1.msra.mxu0 %v83
    %389 = vmatprep.subr.mxu0 0.0
    %390 = vmatpush1.msra.mxu0 0.0
    %391 = vmatprep.subr.mxu0 0.0
    %392 = vmatpush1.msra.mxu0 0.0
    %393 = vmatprep.subr.mxu0 0.0
    %394 = vmatpush1.msra.mxu0 0.0
    %395 = vmatprep.subr.mxu0 0.0
    %396 = vmatpush1.msra.mxu0 0.0
    %397 = vmatprep.subr.mxu0 0.0
    %398 = vmatpush1.msra.mxu0 0.0
    %399 = vmatprep.subr.mxu0 0.0
    %400 = vmatpush1.msra.mxu0 0.0
    %401 = vmatprep.subr.mxu0 0.0
    %402 = vmatpush1.msra.mxu0 0.0
    %403 = vmatprep.subr.mxu0 0.0
    %404 = vmatpush1.msra.mxu0 0.0
    %405 = vmatprep.subr.mxu0 0.0
    %406 = vmatpush1.msra.mxu0 0.0
    %407 = vmatprep.subr.mxu0 0.0
    %408 = vmatpush1.msra.mxu0 0.0
    %409 = vmatprep.subr.mxu0 0.0
    %410 = vmatpush1.msra.mxu0 0.0
    %411 = vmatprep.subr.mxu0 0.0
    %412 = vmatpush1.msra.mxu0 0.0
    %413 = vmatprep.subr.mxu0 0.0
    %414 = vmatpush1.msra.mxu0 0.0
    %415 = vmatprep.subr.mxu0 0.0
    %416 = vmatpush1.msra.mxu0 0.0
    %417 = vmatprep.subr.mxu0 0.0
    %418 = vmatpush1.msra.mxu0 0.0
    %419 = vmatprep.subr.mxu0 0.0
    %420 = vmatpush1.msra.mxu0 0.0
    %421 = vmatprep.mubr.f32.mxu0 0.0
    %422 = vmatmul.mubr.f32.gmra.mrb[0].mxu0 %v352
    %v423 = vpop.f32.mrb[0].mxu0
    %v424 = vadd.f32 %v356, %v423
    %v425 = vpop.f32.mrb[0].mxu0
    %426 = vdwg.mxu0
    %v427 = vsub.f32 %v64, %v350
    %v428 = vmul.f32 %v424, %v65
    %v429 = vadd.f32 %v427, %v428
    %v430 = vmul.f32 %v429, %v66
    %v431 = vadd.f32 %v350, %v430
    %v432 = vsub.f32 %v431, 30.0
    %v433 = vxor.u32 %v432, 2147483648
    %v434 = vmul.f32 %v433, 1.442695
    %v435 = vpow.pop %v434
    %v436 = vadd.f32 %v435, 1.0
    %v437 = vrcp.pop %v436
    %v438 = vmul.f32 1.0, %v437
    %vm439 = vcmp.ge.f32.partialorder %v431, 30.0
    %v440 = vsel %vm439, %v64, %v431
    %v441 = vmul.f32 %v352, %v67
    %v442 = vsel %vm439, 1.0, %v441
    %443 = vst [vmem:[#allocation10 + $0x3] sm:$0x1] %v440
    %444 = vst [vmem:[#allocation11 + $0x3] sm:$0x1] %v438
    %445 = vst [vmem:[#allocation13 + $0x3] sm:$0x1] %v442
    %v446 = vld [vmem:[#allocation9 + $0x4] sm:$0x1]
    %447 = vmatprep.subr.mxu0 0.0
    %448 = vmatpush1.msra.mxu0 %v68
    %449 = vmatprep.subr.mxu0 0.0
    %450 = vmatpush1.msra.mxu0 %v69
    %451 = vmatprep.subr.mxu0 0.0
    %452 = vmatpush1.msra.mxu0 %v70
    %453 = vmatprep.subr.mxu0 0.0
    %454 = vmatpush1.msra.mxu0 %v71
    %455 = vmatprep.subr.mxu0 0.0
    %456 = vmatpush1.msra.mxu0 %v72
    %457 = vmatprep.subr.mxu0 0.0
    %458 = vmatpush1.msra.mxu0 %v73
    %459 = vmatprep.subr.mxu0 0.0
    %460 = vmatpush1.msra.mxu0 %v74
    %461 = vmatprep.subr.mxu0 0.0
    %462 = vmatpush1.msra.mxu0 %v75
    %463 = vmatprep.subr.mxu0 0.0
    %464 = vmatpush1.msra.mxu0 %v76
    %465 = vmatprep.subr.mxu0 0.0
    %466 = vmatpush1.msra.mxu0 %v77
    %467 = vmatprep.subr.mxu0 0.0
    %468 = vmatpush1.msra.mxu0 %v78
    %469 = vmatprep.subr.mxu0 0.0
    %470 = vmatpush1.msra.mxu0 %v79
    %471 = vmatprep.subr.mxu0 0.0
    %472 = vmatpush1.msra.mxu0 %v80
    %473 = vmatprep.subr.mxu0 0.0
    %474 = vmatpush1.msra.mxu0 %v81
    %475 = vmatprep.subr.mxu0 0.0
    %476 = vmatpush1.msra.mxu0 %v82
    %477 = vmatprep.subr.mxu0 0.0
    %478 = vmatpush1.msra.mxu0 %v83
    %479 = vmatprep.subr.mxu0 0.0
    %480 = vmatpush1.msra.mxu0 0.0
    %481 = vmatprep.subr.mxu0 0.0
    %482 = vmatpush1.msra.mxu0 0.0
    %483 = vmatprep.subr.mxu0 0.0
    %484 = vmatpush1.msra.mxu0 0.0
    %485 = vmatprep.subr.mxu0 0.0
    %486 = vmatpush1.msra.mxu0 0.0
    %487 = vmatprep.subr.mxu0 0.0
    %488 = vmatpush1.msra.mxu0 0.0
    %489 = vmatprep.subr.mxu0 0.0
    %490 = vmatpush1.msra.mxu0 0.0
    %491 = vmatprep.subr.mxu0 0.0
    %492 = vmatpush1.msra.mxu0 0.0
    %493 = vmatprep.subr.mxu0 0.0
    %494 = vmatpush1.msra.mxu0 0.0
    %495 = vmatprep.subr.mxu0 0.0
    %496 = vmatpush1.msra.mxu0 0.0
    %497 = vmatprep.subr.mxu0 0.0
    %498 = vmatpush1.msra.mxu0 0.0
    %499 = vmatprep.subr.mxu0 0.0
    %500 = vmatpush1.msra.mxu0 0.0
    %501 = vmatprep.subr.mxu0 0.0
    %502 = vmatpush1.msra.mxu0 0.0
    %503 = vmatprep.subr.mxu0 0.0
    %504 = vmatpush1.msra.mxu0 0.0
    %505 = vmatprep.subr.mxu0 0.0
    %506 = vmatpush1.msra.mxu0 0.0
    %507 = vmatprep.subr.mxu0 0.0
    %508 = vmatpush1.msra.mxu0 0.0
    %509 = vmatprep.subr.mxu0 0.0
    %510 = vmatpush1.msra.mxu0 0.0
    %511 = vmatprep.mubr.f32.mxu0 0.0
    %512 = vmatmul.mubr.f32.gmra.mrb[0].mxu0 %v442
    %v513 = vpop.f32.mrb[0].mxu0
    %v514 = vadd.f32 %v446, %v513
    %v515 = vpop.f32.mrb[0].mxu0
    %516 = vdwg.mxu0
    %v517 = vsub.f32 %v64, %v440
    %v518 = vmul.f32 %v514, %v65
    %v519 = vadd.f32 %v517, %v518
    %v520 = vmul.f32 %v519, %v66
    %v521 = vadd.f32 %v440, %v520
    %v522 = vsub.f32 %v521, 30.0
    %v523 = vxor.u32 %v522, 2147483648
    %v524 = vmul.f32 %v523, 1.442695
    %v525 = vpow.pop %v524
    %v526 = vadd.f32 %v525, 1.0
    %v527 = vrcp.pop %v526
    %v528 = vmul.f32 1.0, %v527
    %vm529 = vcmp.ge.f32.partialorder %v521, 30.0
    %v530 = vsel %vm529, %v64, %v521
    %v531 = vmul.f32 %v442, %v67
    %v532 = vsel %vm529, 1.0, %v531
    %533 = vst [vmem:[#allocation10 + $0x4] sm:$0x1] %v530
    %534 = vst [vmem:[#allocation11 + $0x4] sm:$0x1] %v528
    %535 = vst [vmem:[#allocation13 + $0x4] sm:$0x1] %v532
    %v536 = vld [vmem:[#allocation9 + $0x5] sm:$0x1]
    %537 = vmatprep.subr.mxu0 0.0
    %538 = vmatpush1.msra.mxu0 %v68
    %539 = vmatprep.subr.mxu0 0.0
    %540 = vmatpush1.msra.mxu0 %v69
    %541 = vmatprep.subr.mxu0 0.0
    %542 = vmatpush1.msra.mxu0 %v70
    %543 = vmatprep.subr.mxu0 0.0
    %544 = vmatpush1.msra.mxu0 %v71
    %545 = vmatprep.subr.mxu0 0.0
    %546 = vmatpush1.msra.mxu0 %v72
    %547 = vmatprep.subr.mxu0 0.0
    %548 = vmatpush1.msra.mxu0 %v73
    %549 = vmatprep.subr.mxu0 0.0
    %550 = vmatpush1.msra.mxu0 %v74
    %551 = vmatprep.subr.mxu0 0.0
    %552 = vmatpush1.msra.mxu0 %v75
    %553 = vmatprep.subr.mxu0 0.0
    %554 = vmatpush1.msra.mxu0 %v76
    %555 = vmatprep.subr.mxu0 0.0
    %556 = vmatpush1.msra.mxu0 %v77
    %557 = vmatprep.subr.mxu0 0.0
    %558 = vmatpush1.msra.mxu0 %v78
    %559 = vmatprep.subr.mxu0 0.0
    %560 = vmatpush1.msra.mxu0 %v79
    %561 = vmatprep.subr.mxu0 0.0
    %562 = vmatpush1.msra.mxu0 %v80
    %563 = vmatprep.subr.mxu0 0.0
    %564 = vmatpush1.msra.mxu0 %v81
    %565 = vmatprep.subr.mxu0 0.0
    %566 = vmatpush1.msra.mxu0 %v82
    %567 = vmatprep.subr.mxu0 0.0
    %568 = vmatpush1.msra.mxu0 %v83
    %569 = vmatprep.subr.mxu0 0.0
    %570 = vmatpush1.msra.mxu0 0.0
    %571 = vmatprep.subr.mxu0 0.0
    %572 = vmatpush1.msra.mxu0 0.0
    %573 = vmatprep.subr.mxu0 0.0
    %574 = vmatpush1.msra.mxu0 0.0
    %575 = vmatprep.subr.mxu0 0.0
    %576 = vmatpush1.msra.mxu0 0.0
    %577 = vmatprep.subr.mxu0 0.0
    %578 = vmatpush1.msra.mxu0 0.0
    %579 = vmatprep.subr.mxu0 0.0
    %580 = vmatpush1.msra.mxu0 0.0
    %581 = vmatprep.subr.mxu0 0.0
    %582 = vmatpush1.msra.mxu0 0.0
    %583 = vmatprep.subr.mxu0 0.0
    %584 = vmatpush1.msra.mxu0 0.0
    %585 = vmatprep.subr.mxu0 0.0
    %586 = vmatpush1.msra.mxu0 0.0
    %587 = vmatprep.subr.mxu0 0.0
    %588 = vmatpush1.msra.mxu0 0.0
    %589 = vmatprep.subr.mxu0 0.0
    %590 = vmatpush1.msra.mxu0 0.0
    %591 = vmatprep.subr.mxu0 0.0
    %592 = vmatpush1.msra.mxu0 0.0
    %593 = vmatprep.subr.mxu0 0.0
    %594 = vmatpush1.msra.mxu0 0.0
    %595 = vmatprep.subr.mxu0 0.0
    %596 = vmatpush1.msra.mxu0 0.0
    %597 = vmatprep.subr.mxu0 0.0
    %598 = vmatpush1.msra.mxu0 0.0
    %599 = vmatprep.subr.mxu0 0.0
    %600 = vmatpush1.msra.mxu0 0.0
    %601 = vmatprep.mubr.f32.mxu0 0.0
    %602 = vmatmul.mubr.f32.gmra.mrb[0].mxu0 %v532
    %v603 = vpop.f32.mrb[0].mxu0
    %v604 = vadd.f32 %v536, %v603
    %v605 = vpop.f32.mrb[0].mxu0
    %606 = vdwg.mxu0
    %v607 = vsub.f32 %v64, %v530
    %v608 = vmul.f32 %v604, %v65
    %v609 = vadd.f32 %v607, %v608
    %v610 = vmul.f32 %v609, %v66
    %v611 = vadd.f32 %v530, %v610
    %v612 = vsub.f32 %v611, 30.0
    %v613 = vxor.u32 %v612, 2147483648
    %v614 = vmul.f32 %v613, 1.442695
    %v615 = vpow.pop %v614
    %v616 = vadd.f32 %v615, 1.0
    %v617 = vrcp.pop %v616
    %v618 = vmul.f32 1.0, %v617
    %vm619 = vcmp.ge.f32.partialorder %v611, 30.0
    %v620 = vsel %vm619, %v64, %v611
    %v621 = vmul.f32 %v532, %v67
    %v622 = vsel %vm619, 1.0, %v621
    %623 = vst [vmem:[#allocation10 + $0x5] sm:$0x1] %v620
    %624 = vst [vmem:[#allocation11 + $0x5] sm:$0x1] %v618
    %625 = vst [vmem:[#allocation13 + $0x5] sm:$0x1] %v622
    %v626 = vld [vmem:[#allocation9 + $0x6] sm:$0x1]
    %627 = vmatprep.subr.mxu0 0.0
    %628 = vmatpush1.msra.mxu0 %v68
    %629 = vmatprep.subr.mxu0 0.0
    %630 = vmatpush1.msra.mxu0 %v69
    %631 = vmatprep.subr.mxu0 0.0
    %632 = vmatpush1.msra.mxu0 %v70
    %633 = vmatprep.subr.mxu0 0.0
    %634 = vmatpush1.msra.mxu0 %v71
    %635 = vmatprep.subr.mxu0 0.0
    %636 = vmatpush1.msra.mxu0 %v72
    %637 = vmatprep.subr.mxu0 0.0
    %638 = vmatpush1.msra.mxu0 %v73
    %639 = vmatprep.subr.mxu0 0.0
    %640 = vmatpush1.msra.mxu0 %v74
    %641 = vmatprep.subr.mxu0 0.0
    %642 = vmatpush1.msra.mxu0 %v75
    %643 = vmatprep.subr.mxu0 0.0
    %644 = vmatpush1.msra.mxu0 %v76
    %645 = vmatprep.subr.mxu0 0.0
    %646 = vmatpush1.msra.mxu0 %v77
    %647 = vmatprep.subr.mxu0 0.0
    %648 = vmatpush1.msra.mxu0 %v78
    %649 = vmatprep.subr.mxu0 0.0
    %650 = vmatpush1.msra.mxu0 %v79
    %651 = vmatprep.subr.mxu0 0.0
    %652 = vmatpush1.msra.mxu0 %v80
    %653 = vmatprep.subr.mxu0 0.0
    %654 = vmatpush1.msra.mxu0 %v81
    %655 = vmatprep.subr.mxu0 0.0
    %656 = vmatpush1.msra.mxu0 %v82
    %657 = vmatprep.subr.mxu0 0.0
    %658 = vmatpush1.msra.mxu0 %v83
    %659 = vmatprep.subr.mxu0 0.0
    %660 = vmatpush1.msra.mxu0 0.0
    %661 = vmatprep.subr.mxu0 0.0
    %662 = vmatpush1.msra.mxu0 0.0
    %663 = vmatprep.subr.mxu0 0.0
    %664 = vmatpush1.msra.mxu0 0.0
    %665 = vmatprep.subr.mxu0 0.0
    %666 = vmatpush1.msra.mxu0 0.0
    %667 = vmatprep.subr.mxu0 0.0
    %668 = vmatpush1.msra.mxu0 0.0
    %669 = vmatprep.subr.mxu0 0.0
    %670 = vmatpush1.msra.mxu0 0.0
    %671 = vmatprep.subr.mxu0 0.0
    %672 = vmatpush1.msra.mxu0 0.0
    %673 = vmatprep.subr.mxu0 0.0
    %674 = vmatpush1.msra.mxu0 0.0
    %675 = vmatprep.subr.mxu0 0.0
    %676 = vmatpush1.msra.mxu0 0.0
    %677 = vmatprep.subr.mxu0 0.0
    %678 = vmatpush1.msra.mxu0 0.0
    %679 = vmatprep.subr.mxu0 0.0
    %680 = vmatpush1.msra.mxu0 0.0
    %681 = vmatprep.subr.mxu0 0.0
    %682 = vmatpush1.msra.mxu0 0.0
    %683 = vmatprep.subr.mxu0 0.0
    %684 = vmatpush1.msra.mxu0 0.0
    %685 = vmatprep.subr.mxu0 0.0
    %686 = vmatpush1.msra.mxu0 0.0
    %687 = vmatprep.subr.mxu0 0.0
    %688 = vmatpush1.msra.mxu0 0.0
    %689 = vmatprep.subr.mxu0 0.0
    %690 = vmatpush1.msra.mxu0 0.0
    %691 = vmatprep.mubr.f32.mxu0 0.0
    %692 = vmatmul.mubr.f32.gmra.mrb[0].mxu0 %v622
    %v693 = vpop.f32.mrb[0].mxu0
    %v694 = vadd.f32 %v626, %v693
    %v695 = vpop.f32.mrb[0].mxu0
    %696 = vdwg.mxu0
    %v697 = vsub.f32 %v64, %v620
    %v698 = vmul.f32 %v694, %v65
    %v699 = vadd.f32 %v697, %v698
    %v700 = vmul.f32 %v699, %v66
    %v701 = vadd.f32 %v620, %v700
    %v702 = vsub.f32 %v701, 30.0
    %v703 = vxor.u32 %v702, 2147483648
    %v704 = vmul.f32 %v703, 1.442695
    %v705 = vpow.pop %v704
    %v706 = vadd.f32 %v705, 1.0
    %v707 = vrcp.pop %v706
    %v708 = vmul.f32 1.0, %v707
    %vm709 = vcmp.ge.f32.partialorder %v701, 30.0
    %v710 = vsel %vm709, %v64, %v701
    %v711 = vmul.f32 %v622, %v67
    %v712 = vsel %vm709, 1.0, %v711
    %713 = vst [vmem:[#allocation10 + $0x6] sm:$0x1] %v710
    %714 = vst [vmem:[#allocation11 + $0x6] sm:$0x1] %v708
    %715 = vst [vmem:[#allocation13 + $0x6] sm:$0x1] %v712
    %v716 = vld [vmem:[#allocation9 + $0x7] sm:$0x1]
    %717 = vmatprep.subr.mxu0 0.0
    %718 = vmatpush1.msra.mxu0 %v68
    %719 = vmatprep.subr.mxu0 0.0
    %720 = vmatpush1.msra.mxu0 %v69
    %721 = vmatprep.subr.mxu0 0.0
    %722 = vmatpush1.msra.mxu0 %v70
    %723 = vmatprep.subr.mxu0 0.0
    %724 = vmatpush1.msra.mxu0 %v71
    %725 = vmatprep.subr.mxu0 0.0
    %726 = vmatpush1.msra.mxu0 %v72
    %727 = vmatprep.subr.mxu0 0.0
    %728 = vmatpush1.msra.mxu0 %v73
    %729 = vmatprep.subr.mxu0 0.0
    %730 = vmatpush1.msra.mxu0 %v74
    %731 = vmatprep.subr.mxu0 0.0
    %732 = vmatpush1.msra.mxu0 %v75
    %733 = vmatprep.subr.mxu0 0.0
    %734 = vmatpush1.msra.mxu0 %v76
    %735 = vmatprep.subr.mxu0 0.0
    %736 = vmatpush1.msra.mxu0 %v77
    %737 = vmatprep.subr.mxu0 0.0
    %738 = vmatpush1.msra.mxu0 %v78
    %739 = vmatprep.subr.mxu0 0.0
    %740 = vmatpush1.msra.mxu0 %v79
    %741 = vmatprep.subr.mxu0 0.0
    %742 = vmatpush1.msra.mxu0 %v80
    %743 = vmatprep.subr.mxu0 0.0
    %744 = vmatpush1.msra.mxu0 %v81
    %745 = vmatprep.subr.mxu0 0.0
    %746 = vmatpush1.msra.mxu0 %v82
    %747 = vmatprep.subr.mxu0 0.0
    %748 = vmatpush1.msra.mxu0 %v83
    %749 = vmatprep.subr.mxu0 0.0
    %750 = vmatpush1.msra.mxu0 0.0
    %751 = vmatprep.subr.mxu0 0.0
    %752 = vmatpush1.msra.mxu0 0.0
    %753 = vmatprep.subr.mxu0 0.0
    %754 = vmatpush1.msra.mxu0 0.0
    %755 = vmatprep.subr.mxu0 0.0
    %756 = vmatpush1.msra.mxu0 0.0
    %757 = vmatprep.subr.mxu0 0.0
    %758 = vmatpush1.msra.mxu0 0.0
    %759 = vmatprep.subr.mxu0 0.0
    %760 = vmatpush1.msra.mxu0 0.0
    %761 = vmatprep.subr.mxu0 0.0
    %762 = vmatpush1.msra.mxu0 0.0
    %763 = vmatprep.subr.mxu0 0.0
    %764 = vmatpush1.msra.mxu0 0.0
    %765 = vmatprep.subr.mxu0 0.0
    %766 = vmatpush1.msra.mxu0 0.0
    %767 = vmatprep.subr.mxu0 0.0
    %768 = vmatpush1.msra.mxu0 0.0
    %769 = vmatprep.subr.mxu0 0.0
    %770 = vmatpush1.msra.mxu0 0.0
    %771 = vmatprep.subr.mxu0 0.0
    %772 = vmatpush1.msra.mxu0 0.0
    %773 = vmatprep.subr.mxu0 0.0
    %774 = vmatpush1.msra.mxu0 0.0
    %775 = vmatprep.subr.mxu0 0.0
    %776 = vmatpush1.msra.mxu0 0.0
    %777 = vmatprep.subr.mxu0 0.0
    %778 = vmatpush1.msra.mxu0 0.0
    %779 = vmatprep.subr.mxu0 0.0
    %780 = vmatpush1.msra.mxu0 0.0
    %781 = vmatprep.mubr.f32.mxu0 0.0
    %782 = vmatmul.mubr.f32.gmra.mrb[0].mxu0 %v712
    %v783 = vpop.f32.mrb[0].mxu0
    %v784 = vadd.f32 %v716, %v783
    %v785 = vpop.f32.mrb[0].mxu0
    %786 = vdwg.mxu0
    %v787 = vsub.f32 %v64, %v710
    %v788 = vmul.f32 %v784, %v65
    %v789 = vadd.f32 %v787, %v788
    %v790 = vmul.f32 %v789, %v66
    %v791 = vadd.f32 %v710, %v790
    %v792 = vsub.f32 %v791, 30.0
    %v793 = vxor.u32 %v792, 2147483648
    %v794 = vmul.f32 %v793, 1.442695
    %v795 = vpow.pop %v794
    %v796 = vadd.f32 %v795, 1.0
    %v797 = vrcp.pop %v796
    %v798 = vmul.f32 1.0, %v797
    %vm799 = vcmp.ge.f32.partialorder %v791, 30.0
    %v800 = vsel %vm799, %v64, %v791
    %v801 = vmul.f32 %v712, %v67
    %v802 = vsel %vm799, 1.0, %v801
    %803 = vst [vmem:[#allocation10 + $0x7] sm:$0x1] %v800
    %804 = vst [vmem:[#allocation11 + $0x7] sm:$0x1] %v798
    %805 = vst [vmem:[#allocation13 + $0x7] sm:$0x1] %v802
    %806 = vst [vmem:[#allocation2] sm:$0x1] %v800
    %807 = vst [vmem:[#allocation3] sm:$0x1] %v802
    // Predicated region
    $region30: #{tpu_custom_call.1} parent=1 // pred_check
      _
    $region31: #{tpu_custom_call.1} parent=1 // pred_check_branch
      %809 = sbr.rel (0) target = $region33
    $region32: #{tpu_custom_call.1} parent=1 // pred_region
      %s811 = ssub.s32 128, 128
      %812 = vsyncadd [#allocation6], %s811
      %s814 = sshll.u32 [#allocation10], 4
      %s815 = int_to_ptr.vmem [resolvable:$true] %s814
      %817 = dma.vmem_to_hbm [thread:$0]  %s815, 128, %s3, [#allocation6]
    $region33: #{tpu_custom_call.1} parent=1 // pred_fallthru
      _
    // Predicated region
    $region34: #{tpu_custom_call.1} parent=1 // pred_check
      _
    $region35: #{tpu_custom_call.1} parent=1 // pred_check_branch
      %819 = sbr.rel (0) target = $region37
    $region36: #{tpu_custom_call.1} parent=1 // pred_region
      %s821 = ssub.s32 128, 128
      %822 = vsyncadd [#allocation12], %s821
      %s824 = sshll.u32 [#allocation11], 4
      %s825 = int_to_ptr.vmem [resolvable:$true] %s824
      %827 = dma.vmem_to_hbm [thread:$0]  %s825, 128, %s4, [#allocation12]
    $region37: #{tpu_custom_call.1} parent=1 // pred_fallthru
      _
    // Predicated region
    $region38: #{tpu_custom_call.1} parent=1 // pred_check
      _
    $region39: #{tpu_custom_call.1} parent=1 // pred_check_branch
      %829 = sbr.rel (0) target = $region41
    $region40: #{tpu_custom_call.1} parent=1 // pred_region
      %s831 = ssub.s32 128, 128
      %832 = vsyncadd [#allocation12], %s831
      %s834 = sshll.u32 [#allocation13], 4
      %s835 = int_to_ptr.vmem [resolvable:$true] %s834
      %837 = dma.vmem_to_hbm [thread:$0]  %s835, 128, %s5, [#allocation12]
    $region41: #{tpu_custom_call.1} parent=1 // pred_fallthru
      _
    // Predicated region
    $region42: #{tpu_custom_call.1} parent=1 // pred_check
      _
    $region43: #{tpu_custom_call.1} parent=1 // pred_check_branch
      %839 = sbr.rel (0) target = $region45
    $region44: #{tpu_custom_call.1} parent=1 // pred_region
      %840 = dma.done [#allocation6], 128
    $region45: #{tpu_custom_call.1} parent=1 // pred_fallthru
      _
    // Predicated region
    $region46: #{tpu_custom_call.1} parent=1 // pred_check
      _
    $region47: #{tpu_custom_call.1} parent=1 // pred_check_branch
      %842 = sbr.rel (0) target = $region49
    $region48: #{tpu_custom_call.1} parent=1 // pred_region
      %843 = dma.done [#allocation12], 128
    $region49: #{tpu_custom_call.1} parent=1 // pred_fallthru
      _
    // Predicated region
    $region50: #{tpu_custom_call.1} parent=1 // pred_check
      _
    $region51: #{tpu_custom_call.1} parent=1 // pred_check_branch
      %845 = sbr.rel (0) target = $region53
    $region52: #{tpu_custom_call.1} parent=1 // pred_region
      %846 = dma.done [#allocation12], 128
    $region53: #{tpu_custom_call.1} parent=1 // pred_fallthru
      _
    %847 = vsyncpa [#allocation5], 1
    %848 = vsyncpa [#allocation8], 1
    %849 = vsyncpa [#allocation6], 1
    %850 = vsyncpa [#allocation12], 1

</llo_original>
